<compile_context>
chip_gen: v5e
topology: v5e:2x2
jax: 0.10.0
libtpu: 0.0.40
codegen_flags: <defaults>
</compile_context>

<pallas_src>
import math

import jax
import jax.numpy as jnp
import numpy as np
from jax.experimental import pallas as pl
from jax.experimental.pallas import tpu as pltpu


def _posenc_kernel(sp_ref, x_ref, o_ref):
    """One grid step: encode a (TILE_N, F) row tile into (TILE_N, 2*L*F).

    out[:, j] = sin(x[:, j % F] * scale[j] + phase[j]) where phase is 0 on
    sin blocks and pi/2 on cos blocks -> a single lane-dense sin over the
    full output width (no per-band narrow ops, no 2L-way concat).
    """
    x = x_ref[...]                                    # (tn, F) f32
    reps = o_ref.shape[-1] // x.shape[-1]             # 2 * L (static)
    xw = jnp.tile(x, (1, reps))                       # (tn, 2*L*F), lane-dense
    theta = xw * sp_ref[0:1, :] + sp_ref[1:2, :]      # per-column scale/phase
    o_ref[...] = jnp.sin(theta).astype(o_ref.dtype)   # one dense store


def _round_up(v: int, m: int) -> int:
    return ((v + m - 1) // m) * m


def pos_enc(x: jax.Array, in_features: int, out_features: int,
            *, tile_n: int | None = None,
            out_dtype=jnp.float32) -> jax.Array:
    """Pallas implementation of PosEnc.forward."""
    assert x.ndim == 2, "input must be 2d"
    assert x.shape[1] == in_features, "shape 1 of given tensor != in_features"
    assert out_features % 2 == 0 or out_features == in_features

    if out_features == in_features:
        return x

    x = x.astype(jnp.float32)
    N, F = x.shape
    L = out_features // 2          # number of frequency bands
    out_w = L * 2 * F              # [sin_0 | cos_0 | ... ] lane-dense layout
    out_dtype = jnp.dtype(out_dtype)
    out_bytes = out_dtype.itemsize

    # Per-column (scale, phase) table.  Column b*F + f (b in [0, 2L)) belongs
    # to band i = b // 2; even b -> sin block (phase 0), odd b -> cos block
    # (phase pi/2, since sin(t + pi/2) == cos(t)).
    freqs = (2.0 ** np.arange(L, dtype=np.float64)) * math.pi       # (L,)
    scales = np.repeat(freqs, 2 * F)                                 # (2LF,)
    phases = np.tile(np.repeat(np.array([0.0, math.pi / 2.0]), F), L)
    sp = jnp.asarray(np.stack([scales, phases]).astype(np.float32))  # (2, out_w)

    # Generation-aware VMEM budget (<= ~32 MiB: safe headroom on v7x's 64 MiB
    # VMEM, conservative on v5e/v6e's 128 MiB).
    try:
        vmem_cap = int(getattr(pltpu.get_tpu_info(), "vmem_capacity_bytes",
                               128 * 1024 * 1024))
    except Exception:  # pragma: no cover - trace-time query not available
        vmem_cap = 128 * 1024 * 1024
    budget = min(vmem_cap // 2, 32 * 1024 * 1024)

    # Per-row working set: double-buffered in/out blocks + ~3 f32-wide temps
    # (tiled x, theta, sin result) before the (possibly narrower) output cast.
    per_row = 2 * (F * 4 + out_w * out_bytes) + 3 * out_w * 4
    tn_budget = max(8, (budget // per_row) // 8 * 8)

    if tile_n is None:
        tile_n = min(2048, tn_budget)
    tn = max(1, min(int(tile_n), N))
    if tn >= N and N >= 16:
        # >= 2 grid steps so the "parallel" axis feeds both v7x TensorCores.
        tn = _round_up(pl.cdiv(N, 2), 8)
    if tn < N:
        tn = max(8, (tn // 8) * 8)
    grid = (pl.cdiv(N, tn),)

    needed = tn * per_row + 2 * (2 * out_w * 4) + (2 << 20)
    hard_cap = min(vmem_cap // 2, 48 * 1024 * 1024)
    vmem_limit = int(min(hard_cap, max(needed, 8 * 1024 * 1024)))

    cost = pl.CostEstimate(
        flops=2 * N * out_w,                 # scale mul + phase add / element
        transcendentals=N * out_w,           # one wide sin per output element
        bytes_accessed=N * F * 4 + N * out_w * out_bytes + 2 * out_w * 4,
    )

    return pl.pallas_call(
        _posenc_kernel,
        out_shape=jax.ShapeDtypeStruct((N, out_w), out_dtype),
        grid=grid,
        in_specs=[
            pl.BlockSpec((2, out_w), lambda i: (0, 0)),   # scale/phase table
            pl.BlockSpec((tn, F), lambda i: (i, 0)),      # row tile of x
        ],
        out_specs=pl.BlockSpec((tn, out_w), lambda i: (i, 0)),
        compiler_params=pltpu.CompilerParams(
            dimension_semantics=("parallel",),
            vmem_limit_bytes=vmem_limit,
        ),
        cost_estimate=cost,
    )(sp, x)


def _reference(x: np.ndarray, out_features: int) -> np.ndarray:
    if out_features == x.shape[1]:
        return x
    chunks = []
    for i in range(out_features // 2):
        chunks.append(np.sin((2 ** i) * x * np.pi))
        chunks.append(np.cos((2 ** i) * x * np.pi))
    return np.concatenate(chunks, axis=1)


if __name__ == "__main__":
    key = jax.random.PRNGKey(0)
    # Small, module-consistent shapes: 64 points, 16 input dims, 4 freq bands
    # -> output (64, 128) (lane-dense last dim).
    N, in_features, out_features = 64, 16, 8
    x = jax.random.normal(key, (N, in_features), dtype=jnp.float32)

    y = jax.block_until_ready(pos_enc(x, in_features, out_features))
    y_ref = _reference(np.asarray(x), out_features)
    assert y.shape == y_ref.shape, (y.shape, y_ref.shape)
    np.testing.assert_allclose(np.asarray(y), y_ref, rtol=1e-5, atol=2e-5)

    # Identity path (out_features == in_features): no kernel launch needed.
    y_id = jax.block_until_ready(pos_enc(x, in_features, in_features))
    np.testing.assert_allclose(np.asarray(y_id), np.asarray(x))

    # Ragged-N path (partial last row tile) with explicit small tile.
    x2 = jax.random.normal(jax.random.PRNGKey(1), (20, in_features), jnp.float32)
    y2 = jax.block_until_ready(pos_enc(x2, in_features, out_features, tile_n=8))
    np.testing.assert_allclose(np.asarray(y2),
                               _reference(np.asarray(x2), out_features),
                               rtol=1e-5, atol=2e-5)

    # Optional bf16 output (math in f32, cast only at the store) — halves
    # HBM writeback for memory-bound use; consumer opts in explicitly.
    y_bf = jax.block_until_ready(
        pos_enc(x, in_features, out_features, out_dtype=jnp.bfloat16))
    assert y_bf.dtype == jnp.bfloat16
    np.testing.assert_allclose(np.asarray(y_bf, dtype=np.float32), y_ref,
                               rtol=3e-2, atol=3e-2)

    print("KERNEL_OK")
</pallas_src>

<mosaic_0001>
module attributes {stable_mosaic.version = 11 : i64} {
  func.func @_posenc_kernel(%arg0: i32, %arg1: memref<2x128xf32, #tpu.memory_space<vmem>>, %arg2: memref<32x16xf32, #tpu.memory_space<vmem>>, %arg3: memref<32x128xf32, #tpu.memory_space<vmem>>) attributes {dimension_semantics = [#tpu.dimension_semantics<parallel>], iteration_bounds = array<i64: 2>, scalar_prefetch = 0 : i64, scratch_operands = 0 : i64, tpu.core_type = #tpu.core_type<tc>, window_params = [{pipeline_mode = #tpu.pipeline_mode<synchronous>, transform_indices = @transform_0, window_bounds = array<i64: 2, 128>}, {transform_indices = @transform_1, window_bounds = array<i64: 32, 16>}, {transform_indices = @transform_2, window_bounds = array<i64: 32, 128>}]} {
    %c0 = arith.constant 0 : index
    %c0_0 = arith.constant 0 : index
    %0 = vector.load %arg2[%c0, %c0_0] : memref<32x16xf32, #tpu.memory_space<vmem>>, vector<32x16xf32>
    %1 = tpu.concatenate %0, %0, %0, %0, %0, %0, %0, %0 in 1 : vector<32x16xf32>, vector<32x16xf32>, vector<32x16xf32>, vector<32x16xf32>, vector<32x16xf32>, vector<32x16xf32>, vector<32x16xf32>, vector<32x16xf32> -> vector<32x128xf32>
    %c0_1 = arith.constant 0 : index
    %c0_2 = arith.constant 0 : index
    %2 = vector.load %arg1[%c0_1, %c0_2] : memref<2x128xf32, #tpu.memory_space<vmem>>, vector<1x128xf32>
    %3 = vector.broadcast %2 : vector<1x128xf32> to vector<32x128xf32>
    %4 = arith.mulf %1, %3 : vector<32x128xf32>
    %c1 = arith.constant 1 : index
    %c0_3 = arith.constant 0 : index
    %5 = vector.load %arg1[%c1, %c0_3] : memref<2x128xf32, #tpu.memory_space<vmem>>, vector<1x128xf32>
    %6 = vector.broadcast %5 : vector<1x128xf32> to vector<32x128xf32>
    %7 = arith.addf %4, %6 : vector<32x128xf32>
    %8 = math.sin %7 : vector<32x128xf32>
    %c0_4 = arith.constant 0 : index
    %c0_5 = arith.constant 0 : index
    %9 = vector.load %arg3[%c0_4, %c0_5] : memref<32x128xf32, #tpu.memory_space<vmem>>, vector<32x128xf32>
    tpu.vector_store %arg3[%c0_4, %c0_5], %8 {strides = array<i32>} : memref<32x128xf32, #tpu.memory_space<vmem>>, vector<32x128xf32>,
    return
  }
  func.func @transform_0(%arg0: i32) -> (i32, i32) {
    %c0_i32 = arith.constant 0 : i32
    %c0_i32_0 = arith.constant 0 : i32
    %c0_i32_1 = arith.constant 0 : i32
    return %c0_i32, %c0_i32_0 : i32, i32
  }
  func.func @transform_1(%arg0: i32) -> (i32, i32) {
    %c0_i32 = arith.constant 0 : i32
    %c0_i32_0 = arith.constant 0 : i32
    return %arg0, %c0_i32 : i32, i32
  }
  func.func @transform_2(%arg0: i32) -> (i32, i32) {
    %c0_i32 = arith.constant 0 : i32
    %c0_i32_0 = arith.constant 0 : i32
    return %arg0, %c0_i32 : i32, i32
  }
}

</mosaic_0001>

<llo_original>
// kernel: tpu_custom_call.1
$region0: #{tpu_custom_call.1}
  #allocation0 [shape = 'u32[]', space=smem, size = 0x4, offset = 0x4, fixed_abs, tag = 'smem constant byte address 0x4 - core index']
  #allocation1 [shape = 'u32[72,128]{1,0:T(1,128)}', space=vmem, size = 0x9000, scoped, tag = 'internal scratch']
  %s0 = inlined_call_operand.vmem [shape: f32[2,128], index: 0, kind: input, shape index: {}]
  %s1 = inlined_call_operand.vmem [shape: f32[64,16], index: 1, kind: input, shape index: {}]
  %s2 = inlined_call_operand.hbm [shape: f32[64,128], index: 2, kind: output, shape index: {}]
  %s3 = sld [smem:[#allocation0]]
  $region41: #{tpu_custom_call.1} parent=0
    _
  %s5 = ssub.s32 1, %s3
  %s6 = scalar_select 0, %s5, %s3
  $region1: #{tpu_custom_call.1} parent=0
    #allocation2 [shape = 'u8[32768]{0}', space=vmem, size = 0x8000, scoped, tag = 'output window, operand 0']
    #allocation3 [shape = 's32[2]{0}', space=sflag, size = 0x8, scoped, tag = 'scoped memory for tpu_custom_call.1']
    %7 = vsyncpa [#allocation3], 0
    %s8 = scalar_lea.sflag [#allocation3], 1
    %9 = vsyncpa %s8, 0
    loop: start=0, step=1, limit=4
    $region2: #{tpu_custom_call.1} parent=1 // loop_pre_header
      _
    $region3: #{tpu_custom_call.1} parent=1 // loop_header
      %s11 = sphi 0, %s15
      %p12 = scmp.ge.s32.totalorder %s11, 4
      %s19 = sphi 0, %s19
      %s21 = sphi 0, %s19
      %s22 = sphi 0, %s21
      %s36 = sphi 0, %s22
      %s42 = sphi 0, %s44
      %s45 = sphi 0, %s42
      %s46 = sphi 0, %s45
      %s62 = sphi 0, %s46
      %s68 = sphi 0, %s70
      %s71 = sphi 0, %s68
      %s72 = sphi 0, %s71
      %s88 = sphi 0, %s72
    $region4: #{tpu_custom_call.1} parent=1 // loop_header_branch
      %14 = sbr.rel (%p12) target = $region8
    $region5: #{tpu_custom_call.1} parent=1 // loop_body
      %s16 = ssub.s32 %s11, 1
      %s17 = ssub.s32 %s11, 2
      %s18 = sadd.s32 %s11, 1
      %s20 = sadd.s32 %s19, 1
      %p23 = scmp.eq.s32.totalorder %s11, 1
      %p24 = scmp.ne.s32.totalorder %s19, %s21
      %p25 = scmp.eq.s32.totalorder %s11, 0
      %p26 = por %p24, %p25
      %p27 = scmp.ne.s32.totalorder %s19, %s21
      %p28 = scmp.eq.s32.totalorder %s16, 1
      %p29 = por %p27, %p28
      %p30 = scmp.ne.s32.totalorder %s21, %s22
      %p31 = scmp.eq.s32.totalorder %s16, 0
      %p32 = por %p30, %p31
      %p33 = scmp.ne.s32.totalorder %s21, %s22
      %p34 = scmp.eq.s32.totalorder %s17, 1
      %p35 = por %p33, %p34
      %p37 = scmp.ne.s32.totalorder %s22, %s36
      %p38 = scmp.eq.s32.totalorder %s17, 0
      %p39 = por %p37, %p38
      %s40 = ssub.s32 %s11, %s18
      %p41 = scmp.eq.s32.totalorder %s40, 0
      %s43 = sadd.s32 %s42, 1
      %s44 = scalar_select %p41, %s42, %s43
      %p47 = pneg %p41
      %p48 = scmp.eq.s32.totalorder %s11, 1
      %p49 = por %p47, %p48
      %p50 = scmp.ne.s32.totalorder %s42, %s45
      %p51 = scmp.eq.s32.totalorder %s11, 0
      %p52 = por %p50, %p51
      %p53 = scmp.ne.s32.totalorder %s42, %s45
      %p54 = scmp.eq.s32.totalorder %s16, 1
      %p55 = por %p53, %p54
      %p56 = scmp.ne.s32.totalorder %s45, %s46
      %p57 = scmp.eq.s32.totalorder %s16, 0
      %p58 = por %p56, %p57
      %p59 = scmp.ne.s32.totalorder %s45, %s46
      %p60 = scmp.eq.s32.totalorder %s17, 1
      %p61 = por %p59, %p60
      %p63 = scmp.ne.s32.totalorder %s46, %s62
      %p64 = scmp.eq.s32.totalorder %s17, 0
      %p65 = por %p63, %p64
      %s66 = ssub.s32 %s11, %s18
      %p67 = scmp.eq.s32.totalorder %s66, 0
      %s69 = sadd.s32 %s68, 1
      %s70 = scalar_select %p67, %s68, %s69
      %p73 = pneg %p67
      %p74 = scmp.eq.s32.totalorder %s11, 1
      %p75 = por %p73, %p74
      %p76 = scmp.ne.s32.totalorder %s68, %s71
      %p77 = scmp.eq.s32.totalorder %s11, 0
      %p78 = por %p76, %p77
      %p79 = scmp.ne.s32.totalorder %s68, %s71
      %p80 = scmp.eq.s32.totalorder %s16, 1
      %p81 = por %p79, %p80
      %p82 = scmp.ne.s32.totalorder %s71, %s72
      %p83 = scmp.eq.s32.totalorder %s16, 0
      %p84 = por %p82, %p83
      %p85 = scmp.ne.s32.totalorder %s71, %s72
      %p86 = scmp.eq.s32.totalorder %s17, 1
      %p87 = por %p85, %p86
      %p89 = scmp.ne.s32.totalorder %s72, %s88
      %p90 = scmp.eq.s32.totalorder %s17, 0
      %p91 = por %p89, %p90
      %p92 = scmp.le.s32.totalorder 1, %s11
      %p93 = scmp.lt.s32.totalorder %s11, 3
      %p94 = pnand %p92, %p93
      %p95 = pneg %p94
      // Predicated region
      $region9: #{tpu_custom_call.1} parent=5 // pred_check
        _
      $region10: #{tpu_custom_call.1} parent=5 // pred_check_branch
        %97 = sbr.rel (%p94) target = $region12
      $region11: #{tpu_custom_call.1} parent=5 // pred_region
        %s98 = ssub.s32 %s11, 1
        // Predicated region
        $region13: #{tpu_custom_call.1} parent=11 // pred_check
          %p99 = pneg %p32
        $region14: #{tpu_custom_call.1} parent=11 // pred_check_branch
          %101 = sbr.rel (%p99) target = $region16
        $region15: #{tpu_custom_call.1} parent=11 // pred_region
          _
        $region16: #{tpu_custom_call.1} parent=11 // pred_fallthru
          _
      $region12: #{tpu_custom_call.1} parent=5 // pred_fallthru
        _
      %p102 = scmp.lt.s32.totalorder %s11, 2
      // Predicated region
      $region17: #{tpu_custom_call.1} parent=5 // pred_check
        %p103 = pneg %p102
      $region18: #{tpu_custom_call.1} parent=5 // pred_check_branch
        %105 = sbr.rel (%p103) target = $region20
      $region19: #{tpu_custom_call.1} parent=5 // pred_region
        // Predicated region
        $region21: #{tpu_custom_call.1} parent=19 // pred_check
          %p106 = pneg %p52
        $region22: #{tpu_custom_call.1} parent=19 // pred_check_branch
          %108 = sbr.rel (%p106) target = $region24
        $region23: #{tpu_custom_call.1} parent=19 // pred_region
          %s109 = smul.u32 4, %s11
          %p110 = scmp.lt.s32.totalorder %s109, 7
          %s111 = scalar_select %p110, %s109, 7
          %s112 = smul.addr %s111, 8
          %s113 = scalar_lea.vmem %s1, %s112
          %s114 = smul.u32 4, %s11
        $region24: #{tpu_custom_call.1} parent=19 // pred_fallthru
          _
      $region20: #{tpu_custom_call.1} parent=5 // pred_fallthru
        _
      %p115 = scmp.le.s32.totalorder 1, %s11
      %p116 = scmp.lt.s32.totalorder %s11, 3
      %p117 = pnand %p115, %p116
      %p118 = pneg %p117
      // Predicated region
      $region25: #{tpu_custom_call.1} parent=5 // pred_check
        _
      $region26: #{tpu_custom_call.1} parent=5 // pred_check_branch
        %120 = sbr.rel (%p117) target = $region28
      $region27: #{tpu_custom_call.1} parent=5 // pred_region
        %s121 = ssub.s32 %s11, 1
        %p122 = pneg %p32
        %p123 = pneg %p29
        %s124 = smul.u32 4, %s16
        %p125 = scmp.lt.s32.totalorder %s124, 7
        %s126 = scalar_select %p125, %s124, 7
        %s127 = smul.addr %s126, 8
        %s128 = scalar_lea.vmem %s1, %s127
        %p129 = pneg %p58
        %p130 = pneg %p55
        %p131 = pneg %p84
        %p132 = pneg %p81
        %s133 = sand.u32 %s71, 1
        %s134 = scalar_lea.sflag [#allocation3], %s133
        %s135 = sand.u32 %s71, 1
        %s136 = smul.addr %s135, 32
        %s137 = scalar_lea.vmem [#allocation2], %s136
        %s138 = smul.u32 4, %s16
        %p139 = scmp.lt.s32.totalorder %s138, 7
        %s140 = scalar_select %p139, %s138, 7
        %s141 = smul.addr %s140, 8
        %s142 = scalar_lea.vmem %s1, %s141
        %s143 = smul.u32 4, %s16
        %s144 = smul.u32 4, %s16
        %v145 = vld [vmem:[%s142] sm:$0xff]
        %v146 = vld [vmem:[%s142 + $0x8] sm:$0xff]
        %v147 = vld [vmem:[%s142 + $0x10] sm:$0xff]
        %v148 = vld [vmem:[%s142 + $0x18] sm:$0xff]
        %153 = vrot.lane.b32.xlu0 %v145, 16
        %v154 = vpop.permute.xlu0 %153
        %155 = vrot.lane.b32.xlu0 %v146, 16
        %v156 = vpop.permute.xlu0 %155
        %157 = vrot.lane.b32.xlu0 %v147, 16
        %v158 = vpop.permute.xlu0 %157
        %159 = vrot.lane.b32.xlu0 %v148, 16
        %v160 = vpop.permute.xlu0 %159
        %165 = vrot.lane.b32.xlu0 %v145, 32
        %v166 = vpop.permute.xlu0 %165
        %167 = vrot.lane.b32.xlu0 %v146, 32
        %v168 = vpop.permute.xlu0 %167
        %169 = vrot.lane.b32.xlu0 %v147, 32
        %v170 = vpop.permute.xlu0 %169
        %171 = vrot.lane.b32.xlu0 %v148, 32
        %v172 = vpop.permute.xlu0 %171
        %177 = vrot.lane.b32.xlu0 %v145, 48
        %v178 = vpop.permute.xlu0 %177
        %179 = vrot.lane.b32.xlu0 %v146, 48
        %v180 = vpop.permute.xlu0 %179
        %181 = vrot.lane.b32.xlu0 %v147, 48
        %v182 = vpop.permute.xlu0 %181
        %183 = vrot.lane.b32.xlu0 %v148, 48
        %v184 = vpop.permute.xlu0 %183
        %189 = vrot.lane.b32.xlu0 %v145, 64
        %v190 = vpop.permute.xlu0 %189
        %191 = vrot.lane.b32.xlu0 %v146, 64
        %v192 = vpop.permute.xlu0 %191
        %193 = vrot.lane.b32.xlu0 %v147, 64
        %v194 = vpop.permute.xlu0 %193
        %195 = vrot.lane.b32.xlu0 %v148, 64
        %v196 = vpop.permute.xlu0 %195
        %201 = vrot.lane.b32.xlu0 %v145, 80
        %v202 = vpop.permute.xlu0 %201
        %203 = vrot.lane.b32.xlu0 %v146, 80
        %v204 = vpop.permute.xlu0 %203
        %205 = vrot.lane.b32.xlu0 %v147, 80
        %v206 = vpop.permute.xlu0 %205
        %207 = vrot.lane.b32.xlu0 %v148, 80
        %v208 = vpop.permute.xlu0 %207
        %213 = vrot.lane.b32.xlu0 %v145, 96
        %v214 = vpop.permute.xlu0 %213
        %215 = vrot.lane.b32.xlu0 %v146, 96
        %v216 = vpop.permute.xlu0 %215
        %217 = vrot.lane.b32.xlu0 %v147, 96
        %v218 = vpop.permute.xlu0 %217
        %219 = vrot.lane.b32.xlu0 %v148, 96
        %v220 = vpop.permute.xlu0 %219
        %225 = vrot.lane.b32.xlu0 %v145, 112
        %v226 = vpop.permute.xlu0 %225
        %227 = vrot.lane.b32.xlu0 %v146, 112
        %v228 = vpop.permute.xlu0 %227
        %229 = vrot.lane.b32.xlu0 %v147, 112
        %v230 = vpop.permute.xlu0 %229
        %231 = vrot.lane.b32.xlu0 %v148, 112
        %v232 = vpop.permute.xlu0 %231
        %vm237 = vcmask 130048
        %v238 = vsel %vm237, %v145, %v154
        %v239 = vsel %vm237, %v146, %v156
        %v240 = vsel %vm237, %v147, %v158
        %v241 = vsel %vm237, %v148, %v160
        %vm242 = vcmask 261120
        %v243 = vsel %vm242, %v238, %v166
        %v244 = vsel %vm242, %v239, %v168
        %v245 = vsel %vm242, %v240, %v170
        %v246 = vsel %vm242, %v241, %v172
        %vm247 = vcmask 392192
        %v248 = vsel %vm247, %v243, %v178
        %v249 = vsel %vm247, %v244, %v180
        %v250 = vsel %vm247, %v245, %v182
        %v251 = vsel %vm247, %v246, %v184
        %vm252 = vcmask 523264
        %v253 = vsel %vm252, %v248, %v190
        %v254 = vsel %vm252, %v249, %v192
        %v255 = vsel %vm252, %v250, %v194
        %v256 = vsel %vm252, %v251, %v196
        %vm257 = vcmask 654336
        %v258 = vsel %vm257, %v253, %v202
        %v259 = vsel %vm257, %v254, %v204
        %v260 = vsel %vm257, %v255, %v206
        %v261 = vsel %vm257, %v256, %v208
        %vm262 = vcmask 785408
        %v263 = vsel %vm262, %v258, %v214
        %v264 = vsel %vm262, %v259, %v216
        %v265 = vsel %vm262, %v260, %v218
        %v266 = vsel %vm262, %v261, %v220
        %vm267 = vcmask 916480
        %v268 = vsel %vm267, %v263, %v226
        %v269 = vsel %vm267, %v264, %v228
        %v270 = vsel %vm267, %v265, %v230
        %v271 = vsel %vm267, %v266, %v232
        %v272 = vld [vmem:[%s0] sm:$0x1]
        %v273 = vperm.slane %v272, 0
        %v274 = vmul.f32 %v268, %v273
        %v275 = vmul.f32 %v269, %v273
        %v276 = vmul.f32 %v270, %v273
        %v277 = vmul.f32 %v271, %v273
        %v278 = vld [vmem:[%s0 + $0x1] sm:$0x1]
        %v279 = vperm.slane %v278, 0
        %v280 = vadd.f32 %v274, %v279
        %v281 = vadd.f32 %v275, %v279
        %v282 = vadd.f32 %v276, %v279
        %v283 = vadd.f32 %v277, %v279
        %v284 = vand.u32 2147483647, %v280
        %vm285 = vcmp.le.f32.partialorder %v284, 0.7853982
        %vm286 = vcmp.lt.s32.totalorder %v280, 0
        %v287 = vand.u32 %v280, 2139095040
        %v288 = vshrl.u32 %v287, 23
        %v289 = vsub.s32 %v288, 127
        %v290 = vand.u32 2147483647, %v280
        %v291 = vand.u32 %v290, 8388607
        %v292 = vor.u32 %v291, 8388608
        %v293 = vsub.s32 0, %v292
        %v294 = vadd.s32 %v289, 1
        %vm295 = vcmp.gt.s32.totalorder %v294, 0
        %v296 = vsel %vm295, %v294, 0
        %v297 = vshrl.u32 %v296, 5
        %v298 = vand.u32 %v296, 31
        %v299 = vsub.s32 32, %v298
        %v300 = vshrl.u32 683565275, %v299
        %v301 = vshll.u32 683565275, %v298
        %v302 = vshrl.u32 2475754826, %v299
        %v303 = vor.u32 %v301, %v302
        %v304 = vshll.u32 2475754826, %v298
        %v305 = vshrl.u32 2131351028, %v299
        %v306 = vor.u32 %v304, %v305
        %v307 = vshll.u32 2131351028, %v298
        %v308 = vshrl.u32 2102212464, %v299
        %v309 = vor.u32 %v307, %v308
        %v310 = vshll.u32 2102212464, %v298
        %v311 = vshrl.u32 920167782, %v299
        %v312 = vor.u32 %v310, %v311
        %v313 = vshll.u32 920167782, %v298
        %v314 = vshrl.u32 1326507024, %v299
        %v315 = vor.u32 %v313, %v314
        %vm316 = vcmp.lt.s32.totalorder %v297, 1
        %vm317 = vcmp.lt.s32.totalorder %v297, 2
        %vm318 = vcmp.lt.s32.totalorder %v297, 3
        %vm319 = vcmp.lt.s32.totalorder %v297, 4
        %v320 = vsel %vm316, %v300, %v303
        %v321 = vsel %vm319, %v309, 2102212464
        %v322 = vsel %vm318, %v306, %v321
        %v323 = vsel %vm317, %v320, %v322
        %v324 = vsel %vm316, %v303, %v306
        %v325 = vsel %vm319, %v312, 920167782
        %v326 = vsel %vm318, %v309, %v325
        %v327 = vsel %vm317, %v324, %v326
        %v328 = vsel %vm316, %v306, %v309
        %v329 = vsel %vm319, %v315, 1326507024
        %v330 = vsel %vm318, %v312, %v329
        %v331 = vsel %vm317, %v328, %v330
        %v332 = vshll.u32 %v292, 8
        %v333 = vand.u32 %v332, 65535
        %v334 = vshrl.u32 %v332, 16
        %v335 = vand.u32 %v331, 65535
        %v336 = vshrl.u32 %v331, 16
        %v337 = vmul.u32 %v333, %v335
        %v338 = vmul.u32 %v333, %v336
        %v339 = vmul.u32 %v334, %v335
        %v340 = vmul.u32 %v334, %v336
        %v341 = vshll.u32 %v338, 16
        %v342 = vshrl.u32 %v338, 16
        %v343 = vshll.u32 %v339, 16
        %v344 = vshrl.u32 %v339, 16
        %vm345 = vc.u32 %v337, %v341
        %v346 = vsel %vm345, 1, 0
        %v347 = vadd.s32 %v337, %v341
        %v348 = vadd.s32 %v340, %v346
        %vm349 = vc.u32 %v347, %v343
        %v350 = vsel %vm349, 1, 0
        %v351 = vadd.s32 %v347, %v343
        %v352 = vadd.s32 %v348, %v350
        %v353 = vadd.s32 %v352, %v342
        %v354 = vadd.s32 %v353, %v344
        %v355 = vand.u32 %v332, 65535
        %v356 = vshrl.u32 %v332, 16
        %v357 = vand.u32 %v327, 65535
        %v358 = vshrl.u32 %v327, 16
        %v359 = vmul.u32 %v355, %v357
        %v360 = vmul.u32 %v355, %v358
        %v361 = vmul.u32 %v356, %v357
        %v362 = vmul.u32 %v356, %v358
        %v363 = vshll.u32 %v360, 16
        %v364 = vshrl.u32 %v360, 16
        %v365 = vshll.u32 %v361, 16
        %v366 = vshrl.u32 %v361, 16
        %vm367 = vc.u32 %v359, %v363
        %v368 = vsel %vm367, 1, 0
        %v369 = vadd.s32 %v359, %v363
        %v370 = vadd.s32 %v362, %v368
        %vm371 = vc.u32 %v369, %v365
        %v372 = vsel %vm371, 1, 0
        %v373 = vadd.s32 %v369, %v365
        %v374 = vadd.s32 %v370, %v372
        %v375 = vadd.s32 %v374, %v364
        %v376 = vadd.s32 %v375, %v366
        %v377 = vmul.u32 %v332, %v323
        %v378 = vadd.s32 %v354, %v373
        %vm379 = vc.u32 %v354, %v373
        %v380 = vadd.s32 %v376, 1
        %v381 = vsel %vm379, %v380, %v376
        %v382 = vadd.s32 %v377, %v381
        %v383 = vadd.s32 %v382, 536870912
        %v384 = vshrl.u32 %v383, 30
        %v385 = vshll.u32 %v384, 30
        %v386 = vsub.s32 %v382, %v385
        %vm387 = vcmp.lt.s32.totalorder %v386, 0
        %v388 = vsub.s32 0, %v386
        %v389 = vsel %vm387, %v388, %v386
        %v390 = vclz %v389
        %v391 = vsub.s32 %v390, 2
        %vm392 = vcmp.gt.s32.totalorder 0, %v391
        %v393 = vsel %vm392, 0, %v391
        %v394 = vsub.s32 32, %v393
        %v395 = vshll.u32 %v386, %v393
        %v396 = vshrl.u32 %v378, %v394
        %v397 = vor.u32 %v395, %v396
        %v398 = vsub.s32 4294967266, %v393
        %v399 = vadd.s32 %v398, 127
        %v400 = vshll.u32 %v399, 23
        %v401 = vor.u32 4788187, %v400
        %v402 = vand.u32 2147483647, %v401
        %v404 = vcvt.s32.f32 %v397
        %v405 = vmul.f32 %v404, %v402
        %v406 = vxor.u32 %v405, 2147483648
        %v407 = vsel %vm286, %v406, %v405
        %v408 = vsub.s32 4, %v384
        %v409 = vsel %vm286, %v408, %v384
        %v410 = vsel %vm285, %v280, %v407
        %v411 = vsel %vm285, 0, %v409
        %v412 = vmul.f32 %v410, %v410
        %v413 = vmul.f32 %v412, -0.001358992
        %v414 = vadd.f32 %v413, 0.041655596
        %v415 = vmul.f32 %v412, %v414
        %v416 = vadd.f32 %v415, -0.4999988
        %v417 = vmul.f32 %v412, %v416
        %v418 = vadd.f32 1.0, %v417
        %v419 = vmul.f32 %v410, %v410
        %v420 = vmul.f32 %v419, -0.00019511016
        %v421 = vadd.f32 %v420, 0.008332121
        %v422 = vmul.f32 %v419, %v421
        %v423 = vadd.f32 %v422, -0.16666654
        %v424 = vmul.f32 %v419, %v423
        %v425 = vadd.f32 %v424, 1.0
        %v426 = vmul.f32 %v425, %v410
        %vm427 = vweird.f32 %v280
        %v428 = vadd.s32 %v411, 3
        %v429 = vand.u32 %v428, 3
        %vm430 = vcmp.lt.s32.totalorder %v429, 2
        %vm431 = vcmp.eq.s32.totalorder %v429, 0
        %v432 = vxor.u32 %v426, 2147483648
        %v433 = vsel %vm431, %v418, %v432
        %vm434 = vcmp.eq.s32.totalorder %v429, 2
        %v435 = vxor.u32 %v418, 2147483648
        %v436 = vsel %vm434, %v435, %v426
        %v437 = vsel %vm430, %v433, %v436
        %v438 = vsel %vm427, nan, %v437
        %v439 = vand.u32 2147483647, %v281
        %vm440 = vcmp.le.f32.partialorder %v439, 0.7853982
        %vm441 = vcmp.lt.s32.totalorder %v281, 0
        %v442 = vand.u32 %v281, 2139095040
        %v443 = vshrl.u32 %v442, 23
        %v444 = vsub.s32 %v443, 127
        %v445 = vand.u32 2147483647, %v281
        %v446 = vand.u32 %v445, 8388607
        %v447 = vor.u32 %v446, 8388608
        %v448 = vsub.s32 0, %v447
        %v449 = vadd.s32 %v444, 1
        %vm450 = vcmp.gt.s32.totalorder %v449, 0
        %v451 = vsel %vm450, %v449, 0
        %v452 = vshrl.u32 %v451, 5
        %v453 = vand.u32 %v451, 31
        %v454 = vsub.s32 32, %v453
        %v455 = vshrl.u32 683565275, %v454
        %v456 = vshll.u32 683565275, %v453
        %v457 = vshrl.u32 2475754826, %v454
        %v458 = vor.u32 %v456, %v457
        %v459 = vshll.u32 2475754826, %v453
        %v460 = vshrl.u32 2131351028, %v454
        %v461 = vor.u32 %v459, %v460
        %v462 = vshll.u32 2131351028, %v453
        %v463 = vshrl.u32 2102212464, %v454
        %v464 = vor.u32 %v462, %v463
        %v465 = vshll.u32 2102212464, %v453
        %v466 = vshrl.u32 920167782, %v454
        %v467 = vor.u32 %v465, %v466
        %v468 = vshll.u32 920167782, %v453
        %v469 = vshrl.u32 1326507024, %v454
        %v470 = vor.u32 %v468, %v469
        %vm471 = vcmp.lt.s32.totalorder %v452, 1
        %vm472 = vcmp.lt.s32.totalorder %v452, 2
        %vm473 = vcmp.lt.s32.totalorder %v452, 3
        %vm474 = vcmp.lt.s32.totalorder %v452, 4
        %v475 = vsel %vm471, %v455, %v458
        %v476 = vsel %vm474, %v464, 2102212464
        %v477 = vsel %vm473, %v461, %v476
        %v478 = vsel %vm472, %v475, %v477
        %v479 = vsel %vm471, %v458, %v461
        %v480 = vsel %vm474, %v467, 920167782
        %v481 = vsel %vm473, %v464, %v480
        %v482 = vsel %vm472, %v479, %v481
        %v483 = vsel %vm471, %v461, %v464
        %v484 = vsel %vm474, %v470, 1326507024
        %v485 = vsel %vm473, %v467, %v484
        %v486 = vsel %vm472, %v483, %v485
        %v487 = vshll.u32 %v447, 8
        %v488 = vand.u32 %v487, 65535
        %v489 = vshrl.u32 %v487, 16
        %v490 = vand.u32 %v486, 65535
        %v491 = vshrl.u32 %v486, 16
        %v492 = vmul.u32 %v488, %v490
        %v493 = vmul.u32 %v488, %v491
        %v494 = vmul.u32 %v489, %v490
        %v495 = vmul.u32 %v489, %v491
        %v496 = vshll.u32 %v493, 16
        %v497 = vshrl.u32 %v493, 16
        %v498 = vshll.u32 %v494, 16
        %v499 = vshrl.u32 %v494, 16
        %vm500 = vc.u32 %v492, %v496
        %v501 = vsel %vm500, 1, 0
        %v502 = vadd.s32 %v492, %v496
        %v503 = vadd.s32 %v495, %v501
        %vm504 = vc.u32 %v502, %v498
        %v505 = vsel %vm504, 1, 0
        %v506 = vadd.s32 %v502, %v498
        %v507 = vadd.s32 %v503, %v505
        %v508 = vadd.s32 %v507, %v497
        %v509 = vadd.s32 %v508, %v499
        %v510 = vand.u32 %v487, 65535
        %v511 = vshrl.u32 %v487, 16
        %v512 = vand.u32 %v482, 65535
        %v513 = vshrl.u32 %v482, 16
        %v514 = vmul.u32 %v510, %v512
        %v515 = vmul.u32 %v510, %v513
        %v516 = vmul.u32 %v511, %v512
        %v517 = vmul.u32 %v511, %v513
        %v518 = vshll.u32 %v515, 16
        %v519 = vshrl.u32 %v515, 16
        %v520 = vshll.u32 %v516, 16
        %v521 = vshrl.u32 %v516, 16
        %vm522 = vc.u32 %v514, %v518
        %v523 = vsel %vm522, 1, 0
        %v524 = vadd.s32 %v514, %v518
        %v525 = vadd.s32 %v517, %v523
        %vm526 = vc.u32 %v524, %v520
        %v527 = vsel %vm526, 1, 0
        %v528 = vadd.s32 %v524, %v520
        %v529 = vadd.s32 %v525, %v527
        %v530 = vadd.s32 %v529, %v519
        %v531 = vadd.s32 %v530, %v521
        %v532 = vmul.u32 %v487, %v478
        %v533 = vadd.s32 %v509, %v528
        %vm534 = vc.u32 %v509, %v528
        %v535 = vadd.s32 %v531, 1
        %v536 = vsel %vm534, %v535, %v531
        %v537 = vadd.s32 %v532, %v536
        %v538 = vadd.s32 %v537, 536870912
        %v539 = vshrl.u32 %v538, 30
        %v540 = vshll.u32 %v539, 30
        %v541 = vsub.s32 %v537, %v540
        %vm542 = vcmp.lt.s32.totalorder %v541, 0
        %v543 = vsub.s32 0, %v541
        %v544 = vsel %vm542, %v543, %v541
        %v545 = vclz %v544
        %v546 = vsub.s32 %v545, 2
        %vm547 = vcmp.gt.s32.totalorder 0, %v546
        %v548 = vsel %vm547, 0, %v546
        %v549 = vsub.s32 32, %v548
        %v550 = vshll.u32 %v541, %v548
        %v551 = vshrl.u32 %v533, %v549
        %v552 = vor.u32 %v550, %v551
        %v553 = vsub.s32 4294967266, %v548
        %v554 = vadd.s32 %v553, 127
        %v555 = vshll.u32 %v554, 23
        %v556 = vor.u32 4788187, %v555
        %v557 = vand.u32 2147483647, %v556
        %v559 = vcvt.s32.f32 %v552
        %v560 = vmul.f32 %v559, %v557
        %v561 = vxor.u32 %v560, 2147483648
        %v562 = vsel %vm441, %v561, %v560
        %v563 = vsub.s32 4, %v539
        %v564 = vsel %vm441, %v563, %v539
        %v565 = vsel %vm440, %v281, %v562
        %v566 = vsel %vm440, 0, %v564
        %v567 = vmul.f32 %v565, %v565
        %v568 = vmul.f32 %v567, -0.001358992
        %v569 = vadd.f32 %v568, 0.041655596
        %v570 = vmul.f32 %v567, %v569
        %v571 = vadd.f32 %v570, -0.4999988
        %v572 = vmul.f32 %v567, %v571
        %v573 = vadd.f32 1.0, %v572
        %v574 = vmul.f32 %v565, %v565
        %v575 = vmul.f32 %v574, -0.00019511016
        %v576 = vadd.f32 %v575, 0.008332121
        %v577 = vmul.f32 %v574, %v576
        %v578 = vadd.f32 %v577, -0.16666654
        %v579 = vmul.f32 %v574, %v578
        %v580 = vadd.f32 %v579, 1.0
        %v581 = vmul.f32 %v580, %v565
        %vm582 = vweird.f32 %v281
        %v583 = vadd.s32 %v566, 3
        %v584 = vand.u32 %v583, 3
        %vm585 = vcmp.lt.s32.totalorder %v584, 2
        %vm586 = vcmp.eq.s32.totalorder %v584, 0
        %v587 = vxor.u32 %v581, 2147483648
        %v588 = vsel %vm586, %v573, %v587
        %vm589 = vcmp.eq.s32.totalorder %v584, 2
        %v590 = vxor.u32 %v573, 2147483648
        %v591 = vsel %vm589, %v590, %v581
        %v592 = vsel %vm585, %v588, %v591
        %v593 = vsel %vm582, nan, %v592
        %v594 = vand.u32 2147483647, %v282
        %vm595 = vcmp.le.f32.partialorder %v594, 0.7853982
        %vm596 = vcmp.lt.s32.totalorder %v282, 0
        %v597 = vand.u32 %v282, 2139095040
        %v598 = vshrl.u32 %v597, 23
        %v599 = vsub.s32 %v598, 127
        %v600 = vand.u32 2147483647, %v282
        %v601 = vand.u32 %v600, 8388607
        %v602 = vor.u32 %v601, 8388608
        %v603 = vsub.s32 0, %v602
        %v604 = vadd.s32 %v599, 1
        %vm605 = vcmp.gt.s32.totalorder %v604, 0
        %v606 = vsel %vm605, %v604, 0
        %v607 = vshrl.u32 %v606, 5
        %v608 = vand.u32 %v606, 31
        %v609 = vsub.s32 32, %v608
        %v610 = vshrl.u32 683565275, %v609
        %v611 = vshll.u32 683565275, %v608
        %v612 = vshrl.u32 2475754826, %v609
        %v613 = vor.u32 %v611, %v612
        %v614 = vshll.u32 2475754826, %v608
        %v615 = vshrl.u32 2131351028, %v609
        %v616 = vor.u32 %v614, %v615
        %v617 = vshll.u32 2131351028, %v608
        %v618 = vshrl.u32 2102212464, %v609
        %v619 = vor.u32 %v617, %v618
        %v620 = vshll.u32 2102212464, %v608
        %v621 = vshrl.u32 920167782, %v609
        %v622 = vor.u32 %v620, %v621
        %v623 = vshll.u32 920167782, %v608
        %v624 = vshrl.u32 1326507024, %v609
        %v625 = vor.u32 %v623, %v624
        %vm626 = vcmp.lt.s32.totalorder %v607, 1
        %vm627 = vcmp.lt.s32.totalorder %v607, 2
        %vm628 = vcmp.lt.s32.totalorder %v607, 3
        %vm629 = vcmp.lt.s32.totalorder %v607, 4
        %v630 = vsel %vm626, %v610, %v613
        %v631 = vsel %vm629, %v619, 2102212464
        %v632 = vsel %vm628, %v616, %v631
        %v633 = vsel %vm627, %v630, %v632
        %v634 = vsel %vm626, %v613, %v616
        %v635 = vsel %vm629, %v622, 920167782
        %v636 = vsel %vm628, %v619, %v635
        %v637 = vsel %vm627, %v634, %v636
        %v638 = vsel %vm626, %v616, %v619
        %v639 = vsel %vm629, %v625, 1326507024
        %v640 = vsel %vm628, %v622, %v639
        %v641 = vsel %vm627, %v638, %v640
        %v642 = vshll.u32 %v602, 8
        %v643 = vand.u32 %v642, 65535
        %v644 = vshrl.u32 %v642, 16
        %v645 = vand.u32 %v641, 65535
        %v646 = vshrl.u32 %v641, 16
        %v647 = vmul.u32 %v643, %v645
        %v648 = vmul.u32 %v643, %v646
        %v649 = vmul.u32 %v644, %v645
        %v650 = vmul.u32 %v644, %v646
        %v651 = vshll.u32 %v648, 16
        %v652 = vshrl.u32 %v648, 16
        %v653 = vshll.u32 %v649, 16
        %v654 = vshrl.u32 %v649, 16
        %vm655 = vc.u32 %v647, %v651
        %v656 = vsel %vm655, 1, 0
        %v657 = vadd.s32 %v647, %v651
        %v658 = vadd.s32 %v650, %v656
        %vm659 = vc.u32 %v657, %v653
        %v660 = vsel %vm659, 1, 0
        %v661 = vadd.s32 %v657, %v653
        %v662 = vadd.s32 %v658, %v660
        %v663 = vadd.s32 %v662, %v652
        %v664 = vadd.s32 %v663, %v654
        %v665 = vand.u32 %v642, 65535
        %v666 = vshrl.u32 %v642, 16
        %v667 = vand.u32 %v637, 65535
        %v668 = vshrl.u32 %v637, 16
        %v669 = vmul.u32 %v665, %v667
        %v670 = vmul.u32 %v665, %v668
        %v671 = vmul.u32 %v666, %v667
        %v672 = vmul.u32 %v666, %v668
        %v673 = vshll.u32 %v670, 16
        %v674 = vshrl.u32 %v670, 16
        %v675 = vshll.u32 %v671, 16
        %v676 = vshrl.u32 %v671, 16
        %vm677 = vc.u32 %v669, %v673
        %v678 = vsel %vm677, 1, 0
        %v679 = vadd.s32 %v669, %v673
        %v680 = vadd.s32 %v672, %v678
        %vm681 = vc.u32 %v679, %v675
        %v682 = vsel %vm681, 1, 0
        %v683 = vadd.s32 %v679, %v675
        %v684 = vadd.s32 %v680, %v682
        %v685 = vadd.s32 %v684, %v674
        %v686 = vadd.s32 %v685, %v676
        %v687 = vmul.u32 %v642, %v633
        %v688 = vadd.s32 %v664, %v683
        %vm689 = vc.u32 %v664, %v683
        %v690 = vadd.s32 %v686, 1
        %v691 = vsel %vm689, %v690, %v686
        %v692 = vadd.s32 %v687, %v691
        %v693 = vadd.s32 %v692, 536870912
        %v694 = vshrl.u32 %v693, 30
        %v695 = vshll.u32 %v694, 30
        %v696 = vsub.s32 %v692, %v695
        %vm697 = vcmp.lt.s32.totalorder %v696, 0
        %v698 = vsub.s32 0, %v696
        %v699 = vsel %vm697, %v698, %v696
        %v700 = vclz %v699
        %v701 = vsub.s32 %v700, 2
        %vm702 = vcmp.gt.s32.totalorder 0, %v701
        %v703 = vsel %vm702, 0, %v701
        %v704 = vsub.s32 32, %v703
        %v705 = vshll.u32 %v696, %v703
        %v706 = vshrl.u32 %v688, %v704
        %v707 = vor.u32 %v705, %v706
        %v708 = vsub.s32 4294967266, %v703
        %v709 = vadd.s32 %v708, 127
        %v710 = vshll.u32 %v709, 23
        %v711 = vor.u32 4788187, %v710
        %v712 = vand.u32 2147483647, %v711
        %v714 = vcvt.s32.f32 %v707
        %v715 = vmul.f32 %v714, %v712
        %v716 = vxor.u32 %v715, 2147483648
        %v717 = vsel %vm596, %v716, %v715
        %v718 = vsub.s32 4, %v694
        %v719 = vsel %vm596, %v718, %v694
        %v720 = vsel %vm595, %v282, %v717
        %v721 = vsel %vm595, 0, %v719
        %v722 = vmul.f32 %v720, %v720
        %v723 = vmul.f32 %v722, -0.001358992
        %v724 = vadd.f32 %v723, 0.041655596
        %v725 = vmul.f32 %v722, %v724
        %v726 = vadd.f32 %v725, -0.4999988
        %v727 = vmul.f32 %v722, %v726
        %v728 = vadd.f32 1.0, %v727
        %v729 = vmul.f32 %v720, %v720
        %v730 = vmul.f32 %v729, -0.00019511016
        %v731 = vadd.f32 %v730, 0.008332121
        %v732 = vmul.f32 %v729, %v731
        %v733 = vadd.f32 %v732, -0.16666654
        %v734 = vmul.f32 %v729, %v733
        %v735 = vadd.f32 %v734, 1.0
        %v736 = vmul.f32 %v735, %v720
        %vm737 = vweird.f32 %v282
        %v738 = vadd.s32 %v721, 3
        %v739 = vand.u32 %v738, 3
        %vm740 = vcmp.lt.s32.totalorder %v739, 2
        %vm741 = vcmp.eq.s32.totalorder %v739, 0
        %v742 = vxor.u32 %v736, 2147483648
        %v743 = vsel %vm741, %v728, %v742
        %vm744 = vcmp.eq.s32.totalorder %v739, 2
        %v745 = vxor.u32 %v728, 2147483648
        %v746 = vsel %vm744, %v745, %v736
        %v747 = vsel %vm740, %v743, %v746
        %v748 = vsel %vm737, nan, %v747
        %v749 = vand.u32 2147483647, %v283
        %vm750 = vcmp.le.f32.partialorder %v749, 0.7853982
        %vm751 = vcmp.lt.s32.totalorder %v283, 0
        %v752 = vand.u32 %v283, 2139095040
        %v753 = vshrl.u32 %v752, 23
        %v754 = vsub.s32 %v753, 127
        %v755 = vand.u32 2147483647, %v283
        %v756 = vand.u32 %v755, 8388607
        %v757 = vor.u32 %v756, 8388608
        %v758 = vsub.s32 0, %v757
        %v759 = vadd.s32 %v754, 1
        %vm760 = vcmp.gt.s32.totalorder %v759, 0
        %v761 = vsel %vm760, %v759, 0
        %v762 = vshrl.u32 %v761, 5
        %v763 = vand.u32 %v761, 31
        %v764 = vsub.s32 32, %v763
        %v765 = vshrl.u32 683565275, %v764
        %v766 = vshll.u32 683565275, %v763
        %v767 = vshrl.u32 2475754826, %v764
        %v768 = vor.u32 %v766, %v767
        %v769 = vshll.u32 2475754826, %v763
        %v770 = vshrl.u32 2131351028, %v764
        %v771 = vor.u32 %v769, %v770
        %v772 = vshll.u32 2131351028, %v763
        %v773 = vshrl.u32 2102212464, %v764
        %v774 = vor.u32 %v772, %v773
        %v775 = vshll.u32 2102212464, %v763
        %v776 = vshrl.u32 920167782, %v764
        %v777 = vor.u32 %v775, %v776
        %v778 = vshll.u32 920167782, %v763
        %v779 = vshrl.u32 1326507024, %v764
        %v780 = vor.u32 %v778, %v779
        %vm781 = vcmp.lt.s32.totalorder %v762, 1
        %vm782 = vcmp.lt.s32.totalorder %v762, 2
        %vm783 = vcmp.lt.s32.totalorder %v762, 3
        %vm784 = vcmp.lt.s32.totalorder %v762, 4
        %v785 = vsel %vm781, %v765, %v768
        %v786 = vsel %vm784, %v774, 2102212464
        %v787 = vsel %vm783, %v771, %v786
        %v788 = vsel %vm782, %v785, %v787
        %v789 = vsel %vm781, %v768, %v771
        %v790 = vsel %vm784, %v777, 920167782
        %v791 = vsel %vm783, %v774, %v790
        %v792 = vsel %vm782, %v789, %v791
        %v793 = vsel %vm781, %v771, %v774
        %v794 = vsel %vm784, %v780, 1326507024
        %v795 = vsel %vm783, %v777, %v794
        %v796 = vsel %vm782, %v793, %v795
        %v797 = vshll.u32 %v757, 8
        %v798 = vand.u32 %v797, 65535
        %v799 = vshrl.u32 %v797, 16
        %v800 = vand.u32 %v796, 65535
        %v801 = vshrl.u32 %v796, 16
        %v802 = vmul.u32 %v798, %v800
        %v803 = vmul.u32 %v798, %v801
        %v804 = vmul.u32 %v799, %v800
        %v805 = vmul.u32 %v799, %v801
        %v806 = vshll.u32 %v803, 16
        %v807 = vshrl.u32 %v803, 16
        %v808 = vshll.u32 %v804, 16
        %v809 = vshrl.u32 %v804, 16
        %vm810 = vc.u32 %v802, %v806
        %v811 = vsel %vm810, 1, 0
        %v812 = vadd.s32 %v802, %v806
        %v813 = vadd.s32 %v805, %v811
        %vm814 = vc.u32 %v812, %v808
        %v815 = vsel %vm814, 1, 0
        %v816 = vadd.s32 %v812, %v808
        %v817 = vadd.s32 %v813, %v815
        %v818 = vadd.s32 %v817, %v807
        %v819 = vadd.s32 %v818, %v809
        %v820 = vand.u32 %v797, 65535
        %v821 = vshrl.u32 %v797, 16
        %v822 = vand.u32 %v792, 65535
        %v823 = vshrl.u32 %v792, 16
        %v824 = vmul.u32 %v820, %v822
        %v825 = vmul.u32 %v820, %v823
        %v826 = vmul.u32 %v821, %v822
        %v827 = vmul.u32 %v821, %v823
        %v828 = vshll.u32 %v825, 16
        %v829 = vshrl.u32 %v825, 16
        %v830 = vshll.u32 %v826, 16
        %v831 = vshrl.u32 %v826, 16
        %vm832 = vc.u32 %v824, %v828
        %v833 = vsel %vm832, 1, 0
        %v834 = vadd.s32 %v824, %v828
        %v835 = vadd.s32 %v827, %v833
        %vm836 = vc.u32 %v834, %v830
        %v837 = vsel %vm836, 1, 0
        %v838 = vadd.s32 %v834, %v830
        %v839 = vadd.s32 %v835, %v837
        %v840 = vadd.s32 %v839, %v829
        %v841 = vadd.s32 %v840, %v831
        %v842 = vmul.u32 %v797, %v788
        %v843 = vadd.s32 %v819, %v838
        %vm844 = vc.u32 %v819, %v838
        %v845 = vadd.s32 %v841, 1
        %v846 = vsel %vm844, %v845, %v841
        %v847 = vadd.s32 %v842, %v846
        %v848 = vadd.s32 %v847, 536870912
        %v849 = vshrl.u32 %v848, 30
        %v850 = vshll.u32 %v849, 30
        %v851 = vsub.s32 %v847, %v850
        %vm852 = vcmp.lt.s32.totalorder %v851, 0
        %v853 = vsub.s32 0, %v851
        %v854 = vsel %vm852, %v853, %v851
        %v855 = vclz %v854
        %v856 = vsub.s32 %v855, 2
        %vm857 = vcmp.gt.s32.totalorder 0, %v856
        %v858 = vsel %vm857, 0, %v856
        %v859 = vsub.s32 32, %v858
        %v860 = vshll.u32 %v851, %v858
        %v861 = vshrl.u32 %v843, %v859
        %v862 = vor.u32 %v860, %v861
        %v863 = vsub.s32 4294967266, %v858
        %v864 = vadd.s32 %v863, 127
        %v865 = vshll.u32 %v864, 23
        %v866 = vor.u32 4788187, %v865
        %v867 = vand.u32 2147483647, %v866
        %v869 = vcvt.s32.f32 %v862
        %v870 = vmul.f32 %v869, %v867
        %v871 = vxor.u32 %v870, 2147483648
        %v872 = vsel %vm751, %v871, %v870
        %v873 = vsub.s32 4, %v849
        %v874 = vsel %vm751, %v873, %v849
        %v875 = vsel %vm750, %v283, %v872
        %v876 = vsel %vm750, 0, %v874
        %v877 = vmul.f32 %v875, %v875
        %v878 = vmul.f32 %v877, -0.001358992
        %v879 = vadd.f32 %v878, 0.041655596
        %v880 = vmul.f32 %v877, %v879
        %v881 = vadd.f32 %v880, -0.4999988
        %v882 = vmul.f32 %v877, %v881
        %v883 = vadd.f32 1.0, %v882
        %v884 = vmul.f32 %v875, %v875
        %v885 = vmul.f32 %v884, -0.00019511016
        %v886 = vadd.f32 %v885, 0.008332121
        %v887 = vmul.f32 %v884, %v886
        %v888 = vadd.f32 %v887, -0.16666654
        %v889 = vmul.f32 %v884, %v888
        %v890 = vadd.f32 %v889, 1.0
        %v891 = vmul.f32 %v890, %v875
        %vm892 = vweird.f32 %v283
        %v893 = vadd.s32 %v876, 3
        %v894 = vand.u32 %v893, 3
        %vm895 = vcmp.lt.s32.totalorder %v894, 2
        %vm896 = vcmp.eq.s32.totalorder %v894, 0
        %v897 = vxor.u32 %v891, 2147483648
        %v898 = vsel %vm896, %v883, %v897
        %vm899 = vcmp.eq.s32.totalorder %v894, 2
        %v900 = vxor.u32 %v883, 2147483648
        %v901 = vsel %vm899, %v900, %v891
        %v902 = vsel %vm895, %v898, %v901
        %v903 = vsel %vm892, nan, %v902
        %904 = vst [vmem:[%s137] sm:$0xff] %v438
        %905 = vst [vmem:[%s137 + $0x8] sm:$0xff] %v593
        %906 = vst [vmem:[%s137 + $0x10] sm:$0xff] %v748
        %907 = vst [vmem:[%s137 + $0x18] sm:$0xff] %v903
        %s908 = sand.u32 %s71, 1
        %s909 = scalar_lea.sflag [#allocation3], %s908
        %s910 = sand.u32 %s71, 1
        %s911 = smul.addr %s910, 32
        %s912 = scalar_lea.vmem [#allocation2], %s911
        // Predicated region
        $region29: #{tpu_custom_call.1} parent=27 // pred_check
          %p913 = pneg %p81
        $region30: #{tpu_custom_call.1} parent=27 // pred_check_branch
          %915 = sbr.rel (%p913) target = $region32
        $region31: #{tpu_custom_call.1} parent=27 // pred_region
          %s916 = smul.u32 4, %s16
          %918 = vsyncadd %s909, 0
          %s919 = smul.addr %s916, 8
          %s920 = scalar_lea.hbm %s2, %s919
          %s921 = sshll.u32 %s912, 4
          %s922 = int_to_ptr.vmem [resolvable:$true] %s921
          %s923 = sshll.u32 %s920, 4
          %s924 = int_to_ptr.hbm [resolvable:$true] %s923
          %929 = dma.vmem_to_hbm [thread:$0]  %s922, 512, %s924, %s909, 128, 128, 8
        $region32: #{tpu_custom_call.1} parent=27 // pred_fallthru
          _
      $region28: #{tpu_custom_call.1} parent=5 // pred_fallthru
        _
      %p930 = scmp.le.s32.totalorder 2, %s11
      // Predicated region
      $region33: #{tpu_custom_call.1} parent=5 // pred_check
        %p931 = pneg %p930
      $region34: #{tpu_custom_call.1} parent=5 // pred_check_branch
        %933 = sbr.rel (%p931) target = $region36
      $region35: #{tpu_custom_call.1} parent=5 // pred_region
        %s934 = ssub.s32 %s11, 2
        // Predicated region
        $region37: #{tpu_custom_call.1} parent=35 // pred_check
          %p935 = pneg %p87
        $region38: #{tpu_custom_call.1} parent=35 // pred_check_branch
          %937 = sbr.rel (%p935) target = $region40
        $region39: #{tpu_custom_call.1} parent=35 // pred_region
          %s938 = sand.u32 %s72, 1
          %s939 = scalar_lea.sflag [#allocation3], %s938
          %s940 = sand.u32 %s72, 1
          %s941 = smul.addr %s940, 32
          %s942 = scalar_lea.vmem [#allocation2], %s941
          %944 = dma.done %s939, 512
        $region40: #{tpu_custom_call.1} parent=35 // pred_fallthru
          _
      $region36: #{tpu_custom_call.1} parent=5 // pred_fallthru
        _
    $region6: #{tpu_custom_call.1} parent=1 // loop_footer
      %s15 = sadd.s32 1, %s11
    $region7: #{tpu_custom_call.1} parent=1 // loop_footer_branch
      %10 = sbr.rel target = $region3
    $region8: #{tpu_custom_call.1} parent=1 // loop_exit
      _
    %945 = vsyncpa [#allocation3], 1
    %s946 = scalar_lea.sflag [#allocation3], 1
    %947 = vsyncpa %s946, 1

</llo_original>
